<compile_context>
chip_gen: v7x
topology: tpu7x:2x2x1
jax: 0.10.0
libtpu: 0.0.40
codegen_flags: <defaults>
</compile_context>

<pallas_src>
import functools

import jax
import jax.numpy as jnp
from jax.experimental import pallas as pl
from jax.experimental.pallas import tpu as pltpu


# ----------------------------------------------------------------------------- kernels


def _layernorm_epilogue(y, params, eps, out_dtype):
    """y: (tm, H) f32 pre-LN activations. params: (3, H) f32 = [bias already added?, ...]."""
    gamma = params[1:2, :]
    beta = params[2:3, :]
    # Two-pass (centered) variance: numerically stable when |mean| >> sigma.
    h = y.shape[-1]
    mean = jnp.sum(y, axis=-1, keepdims=True) * (1.0 / h)
    centered = y - mean
    var = jnp.sum(centered * centered, axis=-1, keepdims=True) * (1.0 / h)
    inv = jax.lax.rsqrt(var + eps)
    return (centered * inv * gamma + beta).astype(out_dtype)


def bert_output_resident_kernel(x_ref, w_ref, params_ref, res_ref, o_ref, *, eps):
    """Weight-resident path.  Grid = (M // tm,).

    x_ref:      (tm, I)  hidden_states tile (GEMM dtype, e.g. bf16)
    w_ref:      (I, H)   full dense weight, DMA'd once and revisited
    params_ref: (3, H)   f32 [dense_bias; ln_gamma; ln_beta]
    res_ref:    (tm, H)  residual tile
    o_ref:      (tm, H)  output tile
    """
    params = params_ref[...]
    # Single full-K MXU matmul, f32 accumulation (stays in the MXU result path; no VMEM
    # accumulator round-trip).
    y = jnp.dot(x_ref[...], w_ref[...], preferred_element_type=jnp.float32)
    # TODO(synk): dropout is identity (inference semantics); training-mode dropout would
    # use pltpu.prng_seed / pltpu.prng_random_bits here before the residual add.
    y = y + params[0:1, :] + res_ref[...].astype(jnp.float32)
    o_ref[...] = _layernorm_epilogue(y, params, eps, o_ref.dtype)


def bert_output_ktiled_kernel(x_ref, w_ref, params_ref, res_ref, o_ref, acc_ref, *, eps):
    """K-tiled fallback.  Grid = (M // tm, I // tk); axis 1 reduces over I.

    acc_ref: (tm, H) f32 accumulator scratch.
    """
    k = pl.program_id(1)
    contrib = jnp.dot(x_ref[...], w_ref[...], preferred_element_type=jnp.float32)

    @pl.when(k == 0)
    def _first():
        acc_ref[...] = contrib          # write, not zero-init + add (saves one vst sweep)

    @pl.when(k > 0)
    def _accum():
        acc_ref[...] += contrib

    @pl.when(k == pl.num_programs(1) - 1)
    def _finalize():
        params = params_ref[...]
        # TODO(synk): dropout is identity (inference semantics).
        y = acc_ref[...] + params[0:1, :] + res_ref[...].astype(jnp.float32)
        o_ref[...] = _layernorm_epilogue(y, params, eps, o_ref.dtype)


# ----------------------------------------------------------------------------- tiling helpers


def _vmem_capacity_bytes():
    try:
        info = pltpu.get_tpu_info()
        cap = getattr(info, "vmem_capacity_bytes", None)
        if cap:
            return int(cap)
    except Exception:
        pass
    return 64 * 1024 * 1024  # conservative fallback: v7x per-TensorCore VMEM


_TM_CANDIDATES = (2048, 1024, 512, 256, 128, 64, 32, 16, 8)
_TK_CANDIDATES = (1024, 512, 256, 128)


def _pick_tm(M, fits):
    cands = [c for c in _TM_CANDIDATES if c <= M and M % c == 0 and fits(c)]
    if not cands:
        return M if fits(M) else None
    # Prefer an even number of row tiles (>= 2): the "parallel" row axis is what shards
    # across v7x's two TensorCores, and an even split avoids a 2:1 imbalance.
    even = [c for c in cands if M // c >= 2 and (M // c) % 2 == 0]
    if even:
        return even[0]
    multi = [c for c in cands if M // c >= 2]
    if multi:
        return multi[0]
    return cands[0]


def _pick_tk(I, fits):
    for c in _TK_CANDIDATES:
        if c <= I and I % c == 0 and fits(c):
            return c
    return I


# ----------------------------------------------------------------------------- wrapper


def bert_output(hidden_states, input_tensor, dense_w, dense_b, ln_gamma, ln_beta,
                *, eps=1e-12, tm=None, tk=None, out_dtype=None, mxu_dtype=jnp.bfloat16):
    """hidden_states: (M, I), input_tensor: (M, H), dense_w: (I, H). Returns (M, H).

    mxu_dtype: dtype the GEMM operands (x, W) are fed to the MXU in.  Defaults to
    bfloat16 (native MXU dtype on all generations); pass jnp.float32 / None for full-
    precision operands.  Accumulation and the epilogue are always f32.
    """
    M, I = hidden_states.shape
    H = input_tensor.shape[-1]
    assert dense_w.shape == (I, H)
    assert input_tensor.shape == (M, H)

    if out_dtype is None:
        out_dtype = hidden_states.dtype

    # One-time cast of the GEMM operands in the wrapper (also halves HBM traffic into
    # the kernel when casting f32 -> bf16).
    if mxu_dtype is not None and hidden_states.dtype != mxu_dtype:
        hidden_states = hidden_states.astype(mxu_dtype)
    if mxu_dtype is not None and dense_w.dtype != mxu_dtype:
        dense_w = dense_w.astype(mxu_dtype)

    x_b = jnp.dtype(hidden_states.dtype).itemsize
    w_b = jnp.dtype(dense_w.dtype).itemsize
    r_b = jnp.dtype(input_tensor.dtype).itemsize
    o_b = jnp.dtype(out_dtype).itemsize

    # Pack bias / gamma / beta into a single resident (3, H) f32 input.
    params = jnp.stack([dense_b, ln_gamma, ln_beta]).astype(jnp.float32)

    capacity = _vmem_capacity_bytes()
    budget = int(capacity * 0.80)  # leave headroom for compiler scratch / semaphores
    param_bytes = 2 * 3 * H * 4

    def resident_footprint(tm_):
        # Count 2x on the weight to stay safe w.r.t. default double-buffer allocation,
        # even though it is only DMA'd once.
        return (2 * I * H * w_b
                + 2 * tm_ * I * x_b
                + 2 * tm_ * H * (r_b + o_b)
                + param_bytes)

    def ktiled_footprint(tm_, tk_):
        return (2 * tk_ * H * w_b
                + 2 * tm_ * tk_ * x_b
                + 2 * tm_ * H * (r_b + o_b)
                + tm_ * H * 4            # f32 accumulator scratch
                + param_bytes)

    # ---- choose tiling -------------------------------------------------------------
    mode = None
    if tk is None or tk >= I:
        tm_r = tm if tm is not None else _pick_tm(M, lambda c: resident_footprint(c) <= budget)
        if tm_r is not None and resident_footprint(tm_r) <= budget:
            mode, tm_sel, tk_sel = "resident", tm_r, I

    if mode is None:
        tk_hint = tk if tk is not None else min(I, 512)
        tm_k = tm if tm is not None else _pick_tm(M, lambda c: ktiled_footprint(c, tk_hint) <= budget)
        if tm_k is None:
            tm_k = M
        tk_k = tk if tk is not None else _pick_tk(I, lambda c: ktiled_footprint(tm_k, c) <= budget)
        mode, tm_sel, tk_sel = "ktiled", tm_k, tk_k

    assert M % tm_sel == 0, f"row tile {tm_sel} must divide M={M}"
    assert I % tk_sel == 0, f"k tile {tk_sel} must divide I={I}"

    footprint = (resident_footprint(tm_sel) if mode == "resident"
                 else ktiled_footprint(tm_sel, tk_sel))
    vmem_limit = int(min(capacity * 0.85,
                         max(footprint * 1.25 + (2 << 20), 16 << 20)))

    # ---- build pallas_call ---------------------------------------------------------
    if mode == "resident":
        kernel = functools.partial(bert_output_resident_kernel, eps=eps)
        return pl.pallas_call(
            kernel,
            out_shape=jax.ShapeDtypeStruct((M, H), out_dtype),
            grid_spec=pltpu.PrefetchScalarGridSpec(
                num_scalar_prefetch=0,
                grid=(M // tm_sel,),
                in_specs=[
                    pl.BlockSpec((tm_sel, I), lambda i: (i, 0)),   # hidden_states tile
                    pl.BlockSpec((I, H), lambda i: (0, 0)),        # resident dense weight
                    pl.BlockSpec((3, H), lambda i: (0, 0)),        # [bias; gamma; beta] f32
                    pl.BlockSpec((tm_sel, H), lambda i: (i, 0)),   # residual tile
                ],
                out_specs=pl.BlockSpec((tm_sel, H), lambda i: (i, 0)),
            ),
            compiler_params=pltpu.CompilerParams(
                dimension_semantics=("parallel",),
                vmem_limit_bytes=vmem_limit,
            ),
        )(hidden_states, dense_w, params, input_tensor)

    # K-tiled fallback (very large I*H).
    kernel = functools.partial(bert_output_ktiled_kernel, eps=eps)
    return pl.pallas_call(
        kernel,
        out_shape=jax.ShapeDtypeStruct((M, H), out_dtype),
        grid_spec=pltpu.PrefetchScalarGridSpec(
            num_scalar_prefetch=0,
            grid=(M // tm_sel, I // tk_sel),
            in_specs=[
                pl.BlockSpec((tm_sel, tk_sel), lambda i, k: (i, k)),   # hidden_states tile
                pl.BlockSpec((tk_sel, H), lambda i, k: (k, 0)),        # dense weight tile
                pl.BlockSpec((3, H), lambda i, k: (0, 0)),             # [bias; gamma; beta]
                pl.BlockSpec((tm_sel, H), lambda i, k: (i, 0)),        # residual tile
            ],
            out_specs=pl.BlockSpec((tm_sel, H), lambda i, k: (i, 0)),
            scratch_shapes=[pltpu.VMEM((tm_sel, H), jnp.float32)],
        ),
        compiler_params=pltpu.CompilerParams(
            dimension_semantics=("parallel", "arbitrary"),
            vmem_limit_bytes=vmem_limit,
        ),
    )(hidden_states, dense_w, params, input_tensor)


# ----------------------------------------------------------------------------- reference


def bert_output_ref(hidden_states, input_tensor, dense_w, dense_b, ln_gamma, ln_beta, eps=1e-12):
    y = jnp.dot(hidden_states, dense_w, precision=jax.lax.Precision.HIGHEST) + dense_b
    y = y + input_tensor
    mean = jnp.mean(y, axis=-1, keepdims=True)
    var = jnp.mean((y - mean) ** 2, axis=-1, keepdims=True)
    return (y - mean) * jax.lax.rsqrt(var + eps) * ln_gamma + ln_beta


# ----------------------------------------------------------------------------- test


if __name__ == "__main__":
    eps = 1e-12
    key = jax.random.PRNGKey(0)

    # --- small config: batch=2, seq=8, hidden_size=32, intermediate_size=128 ---------
    batch, seq, hidden, inter = 2, 8, 32, 128
    k1, k2, k3, k4, k5, k6, k7, k8 = jax.random.split(key, 8)

    hidden_states = jax.random.normal(k1, (batch * seq, inter), dtype=jnp.float32)
    input_tensor = jax.random.normal(k2, (batch * seq, hidden), dtype=jnp.float32)
    # nn.Linear(intermediate_size, hidden_size): torch weight is (H, I); stored here as (I, H).
    dense_w = jax.random.normal(k3, (inter, hidden), dtype=jnp.float32) * 0.02
    dense_b = jax.random.normal(k4, (hidden,), dtype=jnp.float32) * 0.02
    ln_gamma = 1.0 + 0.01 * jax.random.normal(k5, (hidden,), dtype=jnp.float32)
    ln_beta = 0.01 * jax.random.normal(k6, (hidden,), dtype=jnp.float32)

    ref = bert_output_ref(hidden_states, input_tensor, dense_w, dense_b, ln_gamma, ln_beta, eps=eps)

    # 1) f32-operand path (tight tolerance check of the fused math, resident-weight kernel).
    out_f32 = bert_output(hidden_states, input_tensor, dense_w, dense_b, ln_gamma, ln_beta,
                          eps=eps, mxu_dtype=jnp.float32)
    out_f32 = jax.block_until_ready(out_f32)
    assert out_f32.shape == (batch * seq, hidden)
    assert jnp.allclose(out_f32, ref, atol=1e-4, rtol=1e-4), "f32 path mismatch vs reference"

    # 2) Default production path: bf16 GEMM operands, f32 accumulation / epilogue.
    out_bf16 = jax.block_until_ready(
        bert_output(hidden_states, input_tensor, dense_w, dense_b, ln_gamma, ln_beta, eps=eps))
    assert out_bf16.dtype == jnp.float32
    assert jnp.allclose(out_bf16, ref, atol=2e-2, rtol=2e-2), "bf16 path mismatch vs reference"

    # 3) K-tiled fallback kernel coverage (forced via tk < I) on a slightly larger shape.
    M2, I2, H2 = 128, 512, 128
    hs2 = jax.random.normal(k7, (M2, I2), dtype=jnp.float32)
    res2 = jax.random.normal(k8, (M2, H2), dtype=jnp.float32)
    w2 = jax.random.normal(k3, (I2, H2), dtype=jnp.float32) * 0.02
    b2 = jax.random.normal(k4, (H2,), dtype=jnp.float32) * 0.02
    g2 = 1.0 + 0.01 * jax.random.normal(k5, (H2,), dtype=jnp.float32)
    bt2 = 0.01 * jax.random.normal(k6, (H2,), dtype=jnp.float32)

    ref2 = bert_output_ref(hs2, res2, w2, b2, g2, bt2, eps=eps)
    out_kt = jax.block_until_ready(
        bert_output(hs2, res2, w2, b2, g2, bt2, eps=eps, tk=128, mxu_dtype=jnp.float32))
    assert jnp.allclose(out_kt, ref2, atol=1e-4, rtol=1e-4), "k-tiled path mismatch vs reference"

    print("KERNEL_OK")
</pallas_src>

<mosaic_0001>
module attributes {stable_mosaic.version = 11 : i64} {
  func.func @bert_output_resident_kernel(%arg0: i32, %arg1: memref<8x128xf32, #tpu.memory_space<vmem>>, %arg2: memref<128x32xf32, #tpu.memory_space<vmem>>, %arg3: memref<3x32xf32, #tpu.memory_space<vmem>>, %arg4: memref<8x32xf32, #tpu.memory_space<vmem>>, %arg5: memref<8x32xf32, #tpu.memory_space<vmem>>) attributes {dimension_semantics = [#tpu.dimension_semantics<parallel>], iteration_bounds = array<i64: 2>, scalar_prefetch = 0 : i64, scratch_operands = 0 : i64, tpu.core_type = #tpu.core_type<tc>, window_params = [{transform_indices = @transform_0, window_bounds = array<i64: 8, 128>}, {pipeline_mode = #tpu.pipeline_mode<synchronous>, transform_indices = @transform_1, window_bounds = array<i64: 128, 32>}, {pipeline_mode = #tpu.pipeline_mode<synchronous>, transform_indices = @transform_2, window_bounds = array<i64: 3, 32>}, {transform_indices = @transform_3, window_bounds = array<i64: 8, 32>}, {transform_indices = @transform_4, window_bounds = array<i64: 8, 32>}]} {
    %c0 = arith.constant 0 : index
    %c0_0 = arith.constant 0 : index
    %0 = vector.load %arg3[%c0, %c0_0] : memref<3x32xf32, #tpu.memory_space<vmem>>, vector<3x32xf32>
    %c0_1 = arith.constant 0 : index
    %c0_2 = arith.constant 0 : index
    %1 = vector.load %arg1[%c0_1, %c0_2] : memref<8x128xf32, #tpu.memory_space<vmem>>, vector<8x128xf32>
    %c0_3 = arith.constant 0 : index
    %c0_4 = arith.constant 0 : index
    %2 = vector.load %arg2[%c0_3, %c0_4] : memref<128x32xf32, #tpu.memory_space<vmem>>, vector<128x32xf32>
    %cst = arith.constant dense<0.000000e+00> : vector<8x32xf32>
    %3 = tpu.matmul %1, %2, %cst {dimension_numbers = #tpu.dot_dimension_numbers<[1], [0], [0], [1], [0, 0, 1, 1], [], []>} : vector<8x128xf32>, vector<128x32xf32>, vector<8x32xf32> -> vector<8x32xf32>
    %4 = vector.extract_strided_slice %0 {offsets = [0, 0], sizes = [1, 32], strides = [1, 1]} : vector<3x32xf32> to vector<1x32xf32>
    %5 = vector.broadcast %4 : vector<1x32xf32> to vector<8x32xf32>
    %6 = arith.addf %3, %5 : vector<8x32xf32>
    %c0_5 = arith.constant 0 : index
    %c0_6 = arith.constant 0 : index
    %7 = vector.load %arg4[%c0_5, %c0_6] : memref<8x32xf32, #tpu.memory_space<vmem>>, vector<8x32xf32>
    %8 = arith.addf %6, %7 : vector<8x32xf32>
    %9 = vector.extract_strided_slice %0 {offsets = [1, 0], sizes = [1, 32], strides = [1, 1]} : vector<3x32xf32> to vector<1x32xf32>
    %10 = vector.extract_strided_slice %0 {offsets = [2, 0], sizes = [1, 32], strides = [1, 1]} : vector<3x32xf32> to vector<1x32xf32>
    %cst_7 = arith.constant dense<0.000000e+00> : vector<8xf32>
    %11 = vector.multi_reduction <add>, %8, %cst_7 [1] : vector<8x32xf32> to vector<8xf32>
    %12 = vector.shape_cast %11 : vector<8xf32> to vector<8x1xf32>
    %cst_8 = arith.constant 3.125000e-02 : f32
    %13 = vector.broadcast %cst_8 : f32 to vector<8x1xf32>
    %14 = arith.mulf %12, %13 : vector<8x1xf32>
    %15 = vector.broadcast %14 : vector<8x1xf32> to vector<8x32xf32>
    %16 = arith.subf %8, %15 : vector<8x32xf32>
    %17 = arith.mulf %16, %16 : vector<8x32xf32>
    %cst_9 = arith.constant dense<0.000000e+00> : vector<8xf32>
    %18 = vector.multi_reduction <add>, %17, %cst_9 [1] : vector<8x32xf32> to vector<8xf32>
    %19 = vector.shape_cast %18 : vector<8xf32> to vector<8x1xf32>
    %cst_10 = arith.constant 3.125000e-02 : f32
    %20 = vector.broadcast %cst_10 : f32 to vector<8x1xf32>
    %21 = arith.mulf %19, %20 : vector<8x1xf32>
    %cst_11 = arith.constant 9.99999996E-13 : f32
    %22 = vector.broadcast %cst_11 : f32 to vector<8x1xf32>
    %23 = arith.addf %21, %22 : vector<8x1xf32>
    %24 = math.rsqrt %23 : vector<8x1xf32>
    %25 = vector.broadcast %24 : vector<8x1xf32> to vector<8x32xf32>
    %26 = arith.mulf %16, %25 : vector<8x32xf32>
    %27 = vector.broadcast %9 : vector<1x32xf32> to vector<8x32xf32>
    %28 = arith.mulf %26, %27 : vector<8x32xf32>
    %29 = vector.broadcast %10 : vector<1x32xf32> to vector<8x32xf32>
    %30 = arith.addf %28, %29 : vector<8x32xf32>
    %c0_12 = arith.constant 0 : index
    %c0_13 = arith.constant 0 : index
    %31 = vector.load %arg5[%c0_12, %c0_13] : memref<8x32xf32, #tpu.memory_space<vmem>>, vector<8x32xf32>
    tpu.vector_store %arg5[%c0_12, %c0_13], %30 {strides = array<i32>} : memref<8x32xf32, #tpu.memory_space<vmem>>, vector<8x32xf32>,
    return
  }
  func.func @transform_0(%arg0: i32) -> (i32, i32) {
    %c0_i32 = arith.constant 0 : i32
    %c0_i32_0 = arith.constant 0 : i32
    return %arg0, %c0_i32 : i32, i32
  }
  func.func @transform_1(%arg0: i32) -> (i32, i32) {
    %c0_i32 = arith.constant 0 : i32
    %c0_i32_0 = arith.constant 0 : i32
    %c0_i32_1 = arith.constant 0 : i32
    return %c0_i32, %c0_i32_0 : i32, i32
  }
  func.func @transform_2(%arg0: i32) -> (i32, i32) {
    %c0_i32 = arith.constant 0 : i32
    %c0_i32_0 = arith.constant 0 : i32
    %c0_i32_1 = arith.constant 0 : i32
    return %c0_i32, %c0_i32_0 : i32, i32
  }
  func.func @transform_3(%arg0: i32) -> (i32, i32) {
    %c0_i32 = arith.constant 0 : i32
    %c0_i32_0 = arith.constant 0 : i32
    return %arg0, %c0_i32 : i32, i32
  }
  func.func @transform_4(%arg0: i32) -> (i32, i32) {
    %c0_i32 = arith.constant 0 : i32
    %c0_i32_0 = arith.constant 0 : i32
    return %arg0, %c0_i32 : i32, i32
  }
}

</mosaic_0001>

<llo_original>
// kernel: tpu_custom_call.1
$region0: #{tpu_custom_call.1}
  #allocation0 [shape = 'u32[]', space=smem, size = 0x4, offset = 0x4, fixed_abs, tag = 'smem constant byte address 0x4 - core index']
  #allocation1 [shape = 'u32[144,128]{1,0:T(1,128)}', space=vmem, size = 0x12000, scoped, tag = 'internal scratch']
  %s0 = inlined_call_operand.vmem [shape: f32[16,128], index: 0, kind: input, shape index: {}]
  %s1 = inlined_call_operand.vmem [shape: f32[128,32], index: 1, kind: input, shape index: {}]
  %s2 = inlined_call_operand.vmem [shape: f32[3,32], index: 2, kind: input, shape index: {}]
  %s3 = inlined_call_operand.vmem [shape: f32[16,32], index: 3, kind: input, shape index: {}]
  %s4 = inlined_call_operand.hbm [shape: f32[16,32], index: 4, kind: output, shape index: {}]
  %s5 = sld [smem:[#allocation0]]
  $region49: #{tpu_custom_call.1} parent=0
    _
  %s7 = ssub.s32 1, %s5
  %s8 = scalar_select 0, %s7, %s5
  $region1: #{tpu_custom_call.1} parent=0
    #allocation2 [shape = 'u8[8192]{0}', space=vmem, size = 0x2000, scoped, tag = 'output window, operand 0']
    #allocation3 [shape = 's32[2]{0}', space=sflag, size = 0x8, scoped, tag = 'scoped memory for tpu_custom_call.1']
    %9 = vsyncpa [#allocation3], 0
    %s10 = scalar_lea.sflag [#allocation3], 1
    %11 = vsyncpa %s10, 0
    loop: start=0, step=1, limit=4
    $region2: #{tpu_custom_call.1} parent=1 // loop_pre_header
      _
    $region3: #{tpu_custom_call.1} parent=1 // loop_header
      %s13 = sphi 0, %s17
      %p14 = scmp.ge.s32.totalorder %s13, 4
      %s23 = sphi 0, %s25
      %s26 = sphi 0, %s23
      %s27 = sphi 0, %s26
      %s43 = sphi 0, %s27
      %s47 = sphi 0, %s47
      %s49 = sphi 0, %s47
      %s50 = sphi 0, %s49
      %s64 = sphi 0, %s50
      %s68 = sphi 0, %s68
      %s70 = sphi 0, %s68
      %s71 = sphi 0, %s70
      %s85 = sphi 0, %s71
      %s91 = sphi 0, %s93
      %s94 = sphi 0, %s91
      %s95 = sphi 0, %s94
      %s111 = sphi 0, %s95
      %s117 = sphi 0, %s119
      %s120 = sphi 0, %s117
      %s121 = sphi 0, %s120
      %s137 = sphi 0, %s121
    $region4: #{tpu_custom_call.1} parent=1 // loop_header_branch
      %16 = sbr.rel (%p14) target = $region8
    $region5: #{tpu_custom_call.1} parent=1 // loop_body
      %s18 = ssub.s32 %s13, 1
      %s19 = ssub.s32 %s13, 2
      %s20 = sadd.s32 %s13, 1
      %s21 = ssub.s32 %s13, %s20
      %p22 = scmp.eq.s32.totalorder %s21, 0
      %s24 = sadd.s32 %s23, 1
      %s25 = scalar_select %p22, %s23, %s24
      %p28 = pneg %p22
      %p29 = scmp.eq.s32.totalorder %s13, 1
      %p30 = por %p28, %p29
      %p31 = scmp.ne.s32.totalorder %s23, %s26
      %p32 = scmp.eq.s32.totalorder %s13, 0
      %p33 = por %p31, %p32
      %p34 = scmp.ne.s32.totalorder %s23, %s26
      %p35 = scmp.eq.s32.totalorder %s18, 1
      %p36 = por %p34, %p35
      %p37 = scmp.ne.s32.totalorder %s26, %s27
      %p38 = scmp.eq.s32.totalorder %s18, 0
      %p39 = por %p37, %p38
      %p40 = scmp.ne.s32.totalorder %s26, %s27
      %p41 = scmp.eq.s32.totalorder %s19, 1
      %p42 = por %p40, %p41
      %p44 = scmp.ne.s32.totalorder %s27, %s43
      %p45 = scmp.eq.s32.totalorder %s19, 0
      %p46 = por %p44, %p45
      %s48 = sadd.s32 %s47, 1
      %p51 = scmp.eq.s32.totalorder %s13, 1
      %p52 = scmp.ne.s32.totalorder %s47, %s49
      %p53 = scmp.eq.s32.totalorder %s13, 0
      %p54 = por %p52, %p53
      %p55 = scmp.ne.s32.totalorder %s47, %s49
      %p56 = scmp.eq.s32.totalorder %s18, 1
      %p57 = por %p55, %p56
      %p58 = scmp.ne.s32.totalorder %s49, %s50
      %p59 = scmp.eq.s32.totalorder %s18, 0
      %p60 = por %p58, %p59
      %p61 = scmp.ne.s32.totalorder %s49, %s50
      %p62 = scmp.eq.s32.totalorder %s19, 1
      %p63 = por %p61, %p62
      %p65 = scmp.ne.s32.totalorder %s50, %s64
      %p66 = scmp.eq.s32.totalorder %s19, 0
      %p67 = por %p65, %p66
      %s69 = sadd.s32 %s68, 1
      %p72 = scmp.eq.s32.totalorder %s13, 1
      %p73 = scmp.ne.s32.totalorder %s68, %s70
      %p74 = scmp.eq.s32.totalorder %s13, 0
      %p75 = por %p73, %p74
      %p76 = scmp.ne.s32.totalorder %s68, %s70
      %p77 = scmp.eq.s32.totalorder %s18, 1
      %p78 = por %p76, %p77
      %p79 = scmp.ne.s32.totalorder %s70, %s71
      %p80 = scmp.eq.s32.totalorder %s18, 0
      %p81 = por %p79, %p80
      %p82 = scmp.ne.s32.totalorder %s70, %s71
      %p83 = scmp.eq.s32.totalorder %s19, 1
      %p84 = por %p82, %p83
      %p86 = scmp.ne.s32.totalorder %s71, %s85
      %p87 = scmp.eq.s32.totalorder %s19, 0
      %p88 = por %p86, %p87
      %s89 = ssub.s32 %s13, %s20
      %p90 = scmp.eq.s32.totalorder %s89, 0
      %s92 = sadd.s32 %s91, 1
      %s93 = scalar_select %p90, %s91, %s92
      %p96 = pneg %p90
      %p97 = scmp.eq.s32.totalorder %s13, 1
      %p98 = por %p96, %p97
      %p99 = scmp.ne.s32.totalorder %s91, %s94
      %p100 = scmp.eq.s32.totalorder %s13, 0
      %p101 = por %p99, %p100
      %p102 = scmp.ne.s32.totalorder %s91, %s94
      %p103 = scmp.eq.s32.totalorder %s18, 1
      %p104 = por %p102, %p103
      %p105 = scmp.ne.s32.totalorder %s94, %s95
      %p106 = scmp.eq.s32.totalorder %s18, 0
      %p107 = por %p105, %p106
      %p108 = scmp.ne.s32.totalorder %s94, %s95
      %p109 = scmp.eq.s32.totalorder %s19, 1
      %p110 = por %p108, %p109
      %p112 = scmp.ne.s32.totalorder %s95, %s111
      %p113 = scmp.eq.s32.totalorder %s19, 0
      %p114 = por %p112, %p113
      %s115 = ssub.s32 %s13, %s20
      %p116 = scmp.eq.s32.totalorder %s115, 0
      %s118 = sadd.s32 %s117, 1
      %s119 = scalar_select %p116, %s117, %s118
      %p122 = pneg %p116
      %p123 = scmp.eq.s32.totalorder %s13, 1
      %p124 = por %p122, %p123
      %p125 = scmp.ne.s32.totalorder %s117, %s120
      %p126 = scmp.eq.s32.totalorder %s13, 0
      %p127 = por %p125, %p126
      %p128 = scmp.ne.s32.totalorder %s117, %s120
      %p129 = scmp.eq.s32.totalorder %s18, 1
      %p130 = por %p128, %p129
      %p131 = scmp.ne.s32.totalorder %s120, %s121
      %p132 = scmp.eq.s32.totalorder %s18, 0
      %p133 = por %p131, %p132
      %p134 = scmp.ne.s32.totalorder %s120, %s121
      %p135 = scmp.eq.s32.totalorder %s19, 1
      %p136 = por %p134, %p135
      %p138 = scmp.ne.s32.totalorder %s121, %s137
      %p139 = scmp.eq.s32.totalorder %s19, 0
      %p140 = por %p138, %p139
      %p141 = scmp.le.s32.totalorder 1, %s13
      %p142 = scmp.lt.s32.totalorder %s13, 3
      %p143 = pnand %p141, %p142
      %p144 = pneg %p143
      // Predicated region
      $region9: #{tpu_custom_call.1} parent=5 // pred_check
        _
      $region10: #{tpu_custom_call.1} parent=5 // pred_check_branch
        %146 = sbr.rel (%p143) target = $region12
      $region11: #{tpu_custom_call.1} parent=5 // pred_region
        %s147 = ssub.s32 %s13, 1
        // Predicated region
        $region13: #{tpu_custom_call.1} parent=11 // pred_check
          %p148 = pneg %p60
        $region14: #{tpu_custom_call.1} parent=11 // pred_check_branch
          %150 = sbr.rel (%p148) target = $region16
        $region15: #{tpu_custom_call.1} parent=11 // pred_region
          _
        $region16: #{tpu_custom_call.1} parent=11 // pred_fallthru
          _
        // Predicated region
        $region17: #{tpu_custom_call.1} parent=11 // pred_check
          %p151 = pneg %p81
        $region18: #{tpu_custom_call.1} parent=11 // pred_check_branch
          %153 = sbr.rel (%p151) target = $region20
        $region19: #{tpu_custom_call.1} parent=11 // pred_region
          _
        $region20: #{tpu_custom_call.1} parent=11 // pred_fallthru
          _
      $region12: #{tpu_custom_call.1} parent=5 // pred_fallthru
        _
      %p154 = scmp.lt.s32.totalorder %s13, 2
      // Predicated region
      $region21: #{tpu_custom_call.1} parent=5 // pred_check
        %p155 = pneg %p154
      $region22: #{tpu_custom_call.1} parent=5 // pred_check_branch
        %157 = sbr.rel (%p155) target = $region24
      $region23: #{tpu_custom_call.1} parent=5 // pred_region
        // Predicated region
        $region25: #{tpu_custom_call.1} parent=23 // pred_check
          %p158 = pneg %p33
        $region26: #{tpu_custom_call.1} parent=23 // pred_check_branch
          %160 = sbr.rel (%p158) target = $region28
        $region27: #{tpu_custom_call.1} parent=23 // pred_region
          %p161 = scmp.lt.s32.totalorder %s13, 1
          %s162 = scalar_select %p161, %s13, 1
          %s163 = smul.addr %s162, 8
          %s164 = scalar_lea.vmem %s0, %s163
        $region28: #{tpu_custom_call.1} parent=23 // pred_fallthru
          _
        // Predicated region
        $region29: #{tpu_custom_call.1} parent=23 // pred_check
          %p165 = pneg %p101
        $region30: #{tpu_custom_call.1} parent=23 // pred_check_branch
          %167 = sbr.rel (%p165) target = $region32
        $region31: #{tpu_custom_call.1} parent=23 // pred_region
          %p168 = scmp.lt.s32.totalorder %s13, 1
          %s169 = scalar_select %p168, %s13, 1
          %s170 = smul.addr %s169, 8
          %s171 = scalar_lea.vmem %s3, %s170
        $region32: #{tpu_custom_call.1} parent=23 // pred_fallthru
          _
      $region24: #{tpu_custom_call.1} parent=5 // pred_fallthru
        _
      %p172 = scmp.le.s32.totalorder 1, %s13
      %p173 = scmp.lt.s32.totalorder %s13, 3
      %p174 = pnand %p172, %p173
      %p175 = pneg %p174
      // Predicated region
      $region33: #{tpu_custom_call.1} parent=5 // pred_check
        _
      $region34: #{tpu_custom_call.1} parent=5 // pred_check_branch
        %177 = sbr.rel (%p174) target = $region36
      $region35: #{tpu_custom_call.1} parent=5 // pred_region
        %s178 = ssub.s32 %s13, 1
        %p179 = scmp.lt.s32.totalorder %s18, 1
        %s180 = scalar_select %p179, %s18, 1
        %s181 = smul.addr %s180, 8
        %s182 = scalar_lea.vmem %s0, %s181
        %p183 = pneg %p39
        %p184 = pneg %p36
        %p185 = pneg %p60
        %p186 = pneg %p57
        %p187 = pneg %p81
        %p188 = pneg %p78
        %p189 = scmp.lt.s32.totalorder %s18, 1
        %s190 = scalar_select %p189, %s18, 1
        %s191 = smul.addr %s190, 8
        %s192 = scalar_lea.vmem %s3, %s191
        %p193 = pneg %p107
        %p194 = pneg %p104
        %p195 = pneg %p133
        %p196 = pneg %p130
        %s197 = sand.u32 %s120, 1
        %s198 = scalar_lea.sflag [#allocation3], %s197
        %s199 = sand.u32 %s120, 1
        %s200 = smul.addr %s199, 8
        %s201 = scalar_lea.vmem [#allocation2], %s200
        %p202 = scmp.lt.s32.totalorder %s18, 1
        %s203 = scalar_select %p202, %s18, 1
        %s204 = smul.addr %s203, 8
        %s205 = scalar_lea.vmem %s0, %s204
        %p206 = scmp.lt.s32.totalorder %s18, 1
        %s207 = scalar_select %p206, %s18, 1
        %s208 = smul.addr %s207, 8
        %s209 = scalar_lea.vmem %s3, %s208
        %v210 = vld [vmem:[%s2] sm:$0x7]
        %v211 = vld [vmem:[%s205] sm:$0xff]
        %v212 = vld [vmem:[%s1] sm:$0xff]
        %v213 = vld [vmem:[%s1 + $0x8] sm:$0xff]
        %v214 = vld [vmem:[%s1 + $0x10] sm:$0xff]
        %v215 = vld [vmem:[%s1 + $0x18] sm:$0xff]
        %v216 = vld [vmem:[%s1 + $0x20] sm:$0xff]
        %v217 = vld [vmem:[%s1 + $0x28] sm:$0xff]
        %v218 = vld [vmem:[%s1 + $0x30] sm:$0xff]
        %v219 = vld [vmem:[%s1 + $0x38] sm:$0xff]
        %v220 = vld [vmem:[%s1 + $0x40] sm:$0xff]
        %v221 = vld [vmem:[%s1 + $0x48] sm:$0xff]
        %v222 = vld [vmem:[%s1 + $0x50] sm:$0xff]
        %v223 = vld [vmem:[%s1 + $0x58] sm:$0xff]
        %v224 = vld [vmem:[%s1 + $0x60] sm:$0xff]
        %v225 = vld [vmem:[%s1 + $0x68] sm:$0xff]
        %v226 = vld [vmem:[%s1 + $0x70] sm:$0xff]
        %v227 = vld [vmem:[%s1 + $0x78] sm:$0xff]
        %v228 = vlaneseq
        %v229 = vshrl.u32 %v228, 7
        %v230 = vsub.s32 0, %v229
        %v231 = vrot.slane %v210, %v230
        %232 = vmatprep.subr.mxu0 0.0
        %233 = vmatpush1.msra.mxu0 %v212
        %234 = vmatprep.subr.mxu0 0.0
        %235 = vmatpush1.msra.mxu0 %v213
        %236 = vmatprep.subr.mxu0 0.0
        %237 = vmatpush1.msra.mxu0 %v214
        %238 = vmatprep.subr.mxu0 0.0
        %239 = vmatpush1.msra.mxu0 %v215
        %240 = vmatprep.subr.mxu0 0.0
        %241 = vmatpush1.msra.mxu0 %v216
        %242 = vmatprep.subr.mxu0 0.0
        %243 = vmatpush1.msra.mxu0 %v217
        %244 = vmatprep.subr.mxu0 0.0
        %245 = vmatpush1.msra.mxu0 %v218
        %246 = vmatprep.subr.mxu0 0.0
        %247 = vmatpush1.msra.mxu0 %v219
        %248 = vmatprep.subr.mxu0 0.0
        %249 = vmatpush1.msra.mxu0 %v220
        %250 = vmatprep.subr.mxu0 0.0
        %251 = vmatpush1.msra.mxu0 %v221
        %252 = vmatprep.subr.mxu0 0.0
        %253 = vmatpush1.msra.mxu0 %v222
        %254 = vmatprep.subr.mxu0 0.0
        %255 = vmatpush1.msra.mxu0 %v223
        %256 = vmatprep.subr.mxu0 0.0
        %257 = vmatpush1.msra.mxu0 %v224
        %258 = vmatprep.subr.mxu0 0.0
        %259 = vmatpush1.msra.mxu0 %v225
        %260 = vmatprep.subr.mxu0 0.0
        %261 = vmatpush1.msra.mxu0 %v226
        %262 = vmatprep.subr.mxu0 0.0
        %263 = vmatpush1.msra.mxu0 %v227
        %264 = vmatprep.subr.mxu0 0.0
        %265 = vmatpush1.msra.mxu0 0.0
        %266 = vmatprep.subr.mxu0 0.0
        %267 = vmatpush1.msra.mxu0 0.0
        %268 = vmatprep.subr.mxu0 0.0
        %269 = vmatpush1.msra.mxu0 0.0
        %270 = vmatprep.subr.mxu0 0.0
        %271 = vmatpush1.msra.mxu0 0.0
        %272 = vmatprep.subr.mxu0 0.0
        %273 = vmatpush1.msra.mxu0 0.0
        %274 = vmatprep.subr.mxu0 0.0
        %275 = vmatpush1.msra.mxu0 0.0
        %276 = vmatprep.subr.mxu0 0.0
        %277 = vmatpush1.msra.mxu0 0.0
        %278 = vmatprep.subr.mxu0 0.0
        %279 = vmatpush1.msra.mxu0 0.0
        %280 = vmatprep.subr.mxu0 0.0
        %281 = vmatpush1.msra.mxu0 0.0
        %282 = vmatprep.subr.mxu0 0.0
        %283 = vmatpush1.msra.mxu0 0.0
        %284 = vmatprep.subr.mxu0 0.0
        %285 = vmatpush1.msra.mxu0 0.0
        %286 = vmatprep.subr.mxu0 0.0
        %287 = vmatpush1.msra.mxu0 0.0
        %288 = vmatprep.subr.mxu0 0.0
        %289 = vmatpush1.msra.mxu0 0.0
        %290 = vmatprep.subr.mxu0 0.0
        %291 = vmatpush1.msra.mxu0 0.0
        %292 = vmatprep.subr.mxu0 0.0
        %293 = vmatpush1.msra.mxu0 0.0
        %294 = vmatprep.subr.mxu0 0.0
        %295 = vmatpush1.msra.mxu0 0.0
        %296 = vmatprep.mubr.f32.mxu0 0.0
        %297 = vmatmul.mubr.f32.gmra.mrb[0].mxu0 %v211
        %v298 = vpop.f32.mrb[0].mxu0
        %v299 = vadd.f32 %v231, %v298
        %v300 = vpop.f32.mrb[0].mxu0
        %301 = vdwg.mxu0
        %v302 = vld [vmem:[%s209] sm:$0xff]
        %v303 = vadd.f32 %v299, %v302
        %vm304 = vcmask 261120
        %v305 = vsel %vm304, %v303, 0.0
        %306 = vadd.xlane.f32.xlu0 %v305
        %v307 = vpop.xlane.xlu0 %306
        %v308 = vmul.f32 %v307, 0.03125
        %v309 = vsub.f32 %v303, %v308
        %v310 = vmul.f32 %v309, %v309
        %v311 = vsel %vm304, %v310, 0.0
        %312 = vadd.xlane.f32.xlu0 %v311
        %v313 = vpop.xlane.xlu0 %312
        %v314 = vmul.f32 %v313, 0.03125
        %v315 = vadd.f32 %v314, 1e-12
        %v316 = vrsqrt.pop %v315
        %v317 = vmul.f32 %v309, %v316
        %v318 = vlaneseq
        %v319 = vshrl.u32 %v318, 7
        %v320 = vsub.s32 1, %v319
        %v321 = vrot.slane %v210, %v320
        %v322 = vmul.f32 %v317, %v321
        %v323 = vlaneseq
        %v324 = vshrl.u32 %v323, 7
        %v325 = vsub.s32 2, %v324
        %v326 = vrot.slane %v210, %v325
        %v327 = vadd.f32 %v322, %v326
        %328 = vst.msk [vmem:[%s201] sm:$0xff] %vm304, %v327
        %s329 = sand.u32 %s120, 1
        %s330 = scalar_lea.sflag [#allocation3], %s329
        %s331 = sand.u32 %s120, 1
        %s332 = smul.addr %s331, 8
        %s333 = scalar_lea.vmem [#allocation2], %s332
        // Predicated region
        $region37: #{tpu_custom_call.1} parent=35 // pred_check
          %p334 = pneg %p130
        $region38: #{tpu_custom_call.1} parent=35 // pred_check_branch
          %336 = sbr.rel (%p334) target = $region40
        $region39: #{tpu_custom_call.1} parent=35 // pred_region
          %s338 = ssub.s32 128, 128
          %339 = vsyncadd %s330, %s338
          %s340 = smul.addr %s18, 128
          %s341 = scalar_lea.hbm %s4, %s340
          %s343 = sshll.u32 %s333, 4
          %s344 = int_to_ptr.vmem [resolvable:$true] %s343
          %346 = dma.vmem_to_hbm [thread:$0]  %s344, 128, %s341, %s330
        $region40: #{tpu_custom_call.1} parent=35 // pred_fallthru
          _
      $region36: #{tpu_custom_call.1} parent=5 // pred_fallthru
        _
      %p347 = scmp.le.s32.totalorder 2, %s13
      // Predicated region
      $region41: #{tpu_custom_call.1} parent=5 // pred_check
        %p348 = pneg %p347
      $region42: #{tpu_custom_call.1} parent=5 // pred_check_branch
        %350 = sbr.rel (%p348) target = $region44
      $region43: #{tpu_custom_call.1} parent=5 // pred_region
        %s351 = ssub.s32 %s13, 2
        // Predicated region
        $region45: #{tpu_custom_call.1} parent=43 // pred_check
          %p352 = pneg %p136
        $region46: #{tpu_custom_call.1} parent=43 // pred_check_branch
          %354 = sbr.rel (%p352) target = $region48
        $region47: #{tpu_custom_call.1} parent=43 // pred_region
          %s355 = sand.u32 %s121, 1
          %s356 = scalar_lea.sflag [#allocation3], %s355
          %s357 = sand.u32 %s121, 1
          %s358 = smul.addr %s357, 8
          %s359 = scalar_lea.vmem [#allocation2], %s358
          %360 = dma.done %s356, 128
        $region48: #{tpu_custom_call.1} parent=43 // pred_fallthru
          _
      $region44: #{tpu_custom_call.1} parent=5 // pred_fallthru
        _
    $region6: #{tpu_custom_call.1} parent=1 // loop_footer
      %s17 = sadd.s32 1, %s13
    $region7: #{tpu_custom_call.1} parent=1 // loop_footer_branch
      %12 = sbr.rel target = $region3
    $region8: #{tpu_custom_call.1} parent=1 // loop_exit
      _
    %361 = vsyncpa [#allocation3], 1
    %s362 = scalar_lea.sflag [#allocation3], 1
    %363 = vsyncpa %s362, 1

</llo_original>
